<compile_context>
chip_gen: v6e
topology: v6e:2x2x1
jax: 0.10.0
libtpu: 0.0.40
codegen_flags: <defaults>
</compile_context>

<pallas_src>
import functools

import jax
import jax.numpy as jnp
from jax.experimental import pallas as pl
from jax.experimental.pallas import tpu as pltpu


def _round_up(a, b):
    return (a + b - 1) // b * b


# ---------------------------------------------------------------------------
# Kernel
# ---------------------------------------------------------------------------
def ffn_ln_kernel(x_ref, w1_ref, w2_ref, p_ref, o_ref, *, d_valid, eps):
    """One (TM, Dp) row tile: Linear -> ReLU -> Linear, residual add, LayerNorm(d_valid).

    p_ref packs [b1; b2; gamma; beta] as a (4, Dp) f32 block.
    """
    p = p_ref[...].astype(jnp.float32)

    # fc[0]: x @ W1^T + b1  (native-dtype operands on the MXU, f32 accumulation)
    h = jnp.dot(x_ref[...], w1_ref[...], preferred_element_type=jnp.float32)
    h = h + p[0:1, :]
    # fc[1]: Dropout(0.3) -> identity (eval).  fc[2]: ReLU
    h = jnp.maximum(h, 0.0)
    # fc[3]: h @ W2^T + b2
    y = jnp.dot(h.astype(w2_ref.dtype), w2_ref[...],
                preferred_element_type=jnp.float32)
    y = y + p[1:2, :]

    # residual add — cast x at point of use (no f32 copy held across the GEMMs)
    z = y + x_ref[...].astype(jnp.float32)

    # LayerNorm over the true feature width, two-pass (mean, centered variance)
    d_pad = z.shape[-1]
    if d_valid != d_pad:
        col = jax.lax.broadcasted_iota(jnp.int32, z.shape, dimension=1)
        lane_valid = col < d_valid
        zm = jnp.where(lane_valid, z, 0.0)
    else:
        lane_valid = None
        zm = z
    inv_d = jnp.float32(1.0 / d_valid)
    mu = jnp.sum(zm, axis=-1, keepdims=True) * inv_d
    c = z - mu
    if lane_valid is not None:
        c = jnp.where(lane_valid, c, 0.0)
    var = jnp.sum(c * c, axis=-1, keepdims=True) * inv_d
    zn = (z - mu) * jax.lax.rsqrt(var + jnp.float32(eps))
    out = zn * p[2:3, :] + p[3:4, :]
    o_ref[...] = out.astype(o_ref.dtype)


# ---------------------------------------------------------------------------
# Hardware / capability helpers
# ---------------------------------------------------------------------------
def _vmem_capacity_bytes():
    try:
        info = pltpu.get_tpu_info()
        cap = getattr(info, "vmem_capacity_bytes", None)
        if cap:
            return int(cap)
    except Exception:
        pass
    return 64 * 1024 * 1024  # conservative default: v7x per-TensorCore VMEM


_BUFFERED_SUPPORTED = None


def _buffered_supported():
    """Tiny isolated probe: does this build support BlockSpec(pipeline_mode=pl.Buffered)?

    Kept separate from the real kernel so a genuine lowering/VMEM error in the
    real kernel is never silently swallowed.
    """
    global _BUFFERED_SUPPORTED
    if _BUFFERED_SUPPORTED is not None:
        return _BUFFERED_SUPPORTED
    if not hasattr(pl, "Buffered"):
        _BUFFERED_SUPPORTED = False
        return False
    try:
        def _k(a_ref, c_ref, o_ref):
            o_ref[...] = a_ref[...] + c_ref[...]

        probe = pl.pallas_call(
            _k,
            out_shape=jax.ShapeDtypeStruct((16, 128), jnp.float32),
            grid_spec=pltpu.PrefetchScalarGridSpec(
                num_scalar_prefetch=0,
                grid=(2,),
                in_specs=[
                    pl.BlockSpec((8, 128), lambda i: (i, 0),
                                 pipeline_mode=pl.Buffered(3)),
                    pl.BlockSpec((8, 128), lambda i: (0, 0),
                                 pipeline_mode=pl.Buffered(1)),
                ],
                out_specs=pl.BlockSpec((8, 128), lambda i: (i, 0)),
            ),
        )
        jax.block_until_ready(probe(jnp.ones((16, 128), jnp.float32),
                                    jnp.ones((8, 128), jnp.float32)))
        _BUFFERED_SUPPORTED = True
    except Exception:  # narrow: only the capability probe
        _BUFFERED_SUPPORTED = False
    return _BUFFERED_SUPPORTED


def _pick_tile_rows(tile_rows, n_rows, d_pad, w_itemsize, x_itemsize, out_itemsize,
                    weight_bufs, vmem_cap):
    """Largest sublane-aligned row tile whose working set fits the VMEM budget."""
    weight_bytes = 2 * d_pad * d_pad * w_itemsize * weight_bufs + weight_bufs * 8 * d_pad * 4
    # per row: double-buffered x + out tiles, plus ~5 f32 intermediates (h, y/z,
    # centered, masks) live during the epilogue.
    per_row = 2 * d_pad * (x_itemsize + out_itemsize) + 5 * d_pad * 4
    budget = int(vmem_cap * 0.85) - weight_bytes - (2 << 20)
    tm = min(max(8, _round_up(tile_rows, 8)), _round_up(max(n_rows, 1), 8))
    while tm > 8 and tm * per_row > budget:
        tm = _round_up(tm // 2, 8)
    return tm


# ---------------------------------------------------------------------------
# pallas_call construction
# ---------------------------------------------------------------------------
def _make_call(kernel, n_rows, d_pad, tm, out_dtype, w_itemsize, x_itemsize,
               vmem_cap, use_buffered):
    out_itemsize = jnp.dtype(out_dtype).itemsize
    weight_bufs = 1 if use_buffered else 2
    weight_bytes = 2 * d_pad * d_pad * w_itemsize * weight_bufs
    param_bytes = weight_bufs * 8 * d_pad * 4          # (4,Dp) padded to 8 sublanes
    tile_bytes = 2 * tm * d_pad * (x_itemsize + out_itemsize) + 5 * tm * d_pad * 4
    needed = weight_bytes + param_bytes + tile_bytes + (4 << 20)
    vmem_limit = int(min(vmem_cap, max(needed, 32 * 1024 * 1024)))

    inv_kw = dict(pipeline_mode=pl.Buffered(1)) if use_buffered else {}
    # Small-D / VMEM-slack regime (v5e especially): deepen x pipelining to hide
    # per-step DMA latency.
    x_kw = {}
    if (use_buffered and d_pad <= 512
            and needed + tm * d_pad * x_itemsize < vmem_cap // 2):
        x_kw = dict(pipeline_mode=pl.Buffered(3))

    grid = (pl.cdiv(n_rows, tm),)
    return pl.pallas_call(
        kernel,
        out_shape=jax.ShapeDtypeStruct((n_rows, d_pad), out_dtype),
        grid_spec=pltpu.PrefetchScalarGridSpec(
            num_scalar_prefetch=0,
            grid=grid,
            in_specs=[
                pl.BlockSpec((tm, d_pad), lambda i: (i, 0), **x_kw),        # x rows
                pl.BlockSpec((d_pad, d_pad), lambda i: (0, 0), **inv_kw),   # W1^T
                pl.BlockSpec((d_pad, d_pad), lambda i: (0, 0), **inv_kw),   # W2^T
                pl.BlockSpec((4, d_pad), lambda i: (0, 0), **inv_kw),       # [b1;b2;g;b]
            ],
            out_specs=pl.BlockSpec((tm, d_pad), lambda i: (i, 0)),
        ),
        compiler_params=pltpu.CompilerParams(
            dimension_semantics=("parallel",),
            vmem_limit_bytes=vmem_limit,
        ),
    )


# ---------------------------------------------------------------------------
# Host-side wrappers
# ---------------------------------------------------------------------------
def prepare_ffn_params(w1, b1, w2, b2, gamma, beta, *, compute_dtype=None):
    """One-time layout work (transpose, lane pad, param packing, optional bf16 cast).

    w1/w2 are in PyTorch Linear (out, in) layout; the kernel computes x @ W^T.
    """
    D = w1.shape[0]
    d_pad = _round_up(D, 128)
    wdt = jnp.dtype(compute_dtype) if compute_dtype is not None else w1.dtype
    w1t = w1.T.astype(wdt)
    w2t = w2.T.astype(wdt)
    dp = d_pad - D
    if dp:
        w1t = jnp.pad(w1t, ((0, dp), (0, dp)))
        w2t = jnp.pad(w2t, ((0, dp), (0, dp)))
    params = jnp.stack([b1, b2, gamma, beta]).astype(jnp.float32)   # (4, D)
    if dp:
        params = jnp.pad(params, ((0, 0), (0, dp)))
    return dict(w1t=w1t, w2t=w2t, params=params, d_model=D, d_pad=d_pad)


def feed_forward(x, prepared, *, tile_rows=256, eps=1e-5, compute_dtype=None):
    """x: [batch, m, d_model]; `prepared` from prepare_ffn_params()."""
    B, M, D = x.shape
    assert D == prepared["d_model"]
    d_pad = prepared["d_pad"]
    N = B * M

    xdt = jnp.dtype(compute_dtype) if compute_dtype is not None else x.dtype
    x2 = x.reshape(N, D)
    if x2.dtype != xdt:
        x2 = x2.astype(xdt)
    if d_pad != D:
        x2 = jnp.pad(x2, ((0, 0), (0, d_pad - D)))   # lane-dense stores
    # Rows are NOT padded: grid = cdiv(N, tm); the ragged last tile's OOB rows are
    # masked on write (saves a full activation HBM round trip).

    use_buffered = _buffered_supported()
    vmem_cap = _vmem_capacity_bytes()
    w_itemsize = jnp.dtype(prepared["w1t"].dtype).itemsize
    x_itemsize = jnp.dtype(xdt).itemsize
    out_dtype = x.dtype

    tm = _pick_tile_rows(tile_rows, N, d_pad, w_itemsize, x_itemsize,
                         jnp.dtype(out_dtype).itemsize,
                         1 if use_buffered else 2, vmem_cap)

    kernel = functools.partial(ffn_ln_kernel, d_valid=D, eps=eps)
    call = _make_call(kernel, N, d_pad, tm, out_dtype, w_itemsize, x_itemsize,
                      vmem_cap, use_buffered)
    out = call(x2, prepared["w1t"], prepared["w2t"], prepared["params"])
    return out[:, :D].reshape(B, M, D)


def reference(x, w1, b1, w2, b2, gamma, beta, eps=1e-5):
    xf = x.astype(jnp.float32)
    h = jnp.maximum(xf @ w1.T + b1, 0.0)
    y = h @ w2.T + b2
    z = y + xf
    mu = jnp.mean(z, axis=-1, keepdims=True)
    var = jnp.mean((z - mu) ** 2, axis=-1, keepdims=True)
    return ((z - mu) / jnp.sqrt(var + eps)) * gamma + beta


# ---------------------------------------------------------------------------
# Demo
# ---------------------------------------------------------------------------
if __name__ == "__main__":
    batch, m, d_model = 2, 8, 32

    key = jax.random.PRNGKey(0)
    kx, kw1, kb1, kw2, kb2 = jax.random.split(key, 5)

    x = jax.random.normal(kx, (batch, m, d_model), dtype=jnp.float32)

    # Deterministic param init (PyTorch Linear-style uniform bounds).
    bound = 1.0 / (d_model ** 0.5)
    w1 = jax.random.uniform(kw1, (d_model, d_model), jnp.float32, -bound, bound)
    b1 = jax.random.uniform(kb1, (d_model,), jnp.float32, -bound, bound)
    w2 = jax.random.uniform(kw2, (d_model, d_model), jnp.float32, -bound, bound)
    b2 = jax.random.uniform(kb2, (d_model,), jnp.float32, -bound, bound)
    gamma = jnp.ones((d_model,), jnp.float32)   # nn.LayerNorm defaults
    beta = jnp.zeros((d_model,), jnp.float32)

    ref = reference(x, w1, b1, w2, b2, gamma, beta)

    # Exact f32 path (matches PyTorch default precision).
    prep_f32 = prepare_ffn_params(w1, b1, w2, b2, gamma, beta)
    out_f32 = jax.block_until_ready(feed_forward(x, prep_f32))
    assert out_f32.shape == (batch, m, d_model)
    assert jnp.allclose(out_f32, ref, atol=1e-4, rtol=1e-4), "f32 mismatch vs reference"

    # bf16 GEMM-operand path (perf-recommended config for v5e/v6e/v7x MXUs).
    prep_bf16 = prepare_ffn_params(w1, b1, w2, b2, gamma, beta,
                                   compute_dtype=jnp.bfloat16)
    out_bf16 = jax.block_until_ready(
        feed_forward(x, prep_bf16, compute_dtype=jnp.bfloat16))
    assert out_bf16.shape == (batch, m, d_model)
    assert bool(jnp.all(jnp.isfinite(out_bf16)))
    assert jnp.allclose(out_bf16.astype(jnp.float32), ref, atol=5e-2, rtol=5e-2), \
        "bf16 mismatch vs reference"

    print("KERNEL_OK")
</pallas_src>

<mosaic_0001>
module attributes {stable_mosaic.version = 11 : i64} {
  func.func @ffn_ln_kernel(%arg0: i32, %arg1: memref<16x128xf32, #tpu.memory_space<vmem>>, %arg2: memref<128x128xf32, #tpu.memory_space<vmem>>, %arg3: memref<128x128xf32, #tpu.memory_space<vmem>>, %arg4: memref<4x128xf32, #tpu.memory_space<vmem>>, %arg5: memref<16x128xf32, #tpu.memory_space<vmem>>) attributes {dimension_semantics = [#tpu.dimension_semantics<parallel>], iteration_bounds = array<i64: 1>, scalar_prefetch = 0 : i64, scratch_operands = 0 : i64, tpu.core_type = #tpu.core_type<tc>, window_params = [{transform_indices = @transform_0, window_bounds = array<i64: 16, 128>}, {pipeline_mode = #tpu.pipeline_mode<synchronous>, transform_indices = @transform_1, window_bounds = array<i64: 128, 128>}, {pipeline_mode = #tpu.pipeline_mode<synchronous>, transform_indices = @transform_2, window_bounds = array<i64: 128, 128>}, {pipeline_mode = #tpu.pipeline_mode<synchronous>, transform_indices = @transform_3, window_bounds = array<i64: 4, 128>}, {transform_indices = @transform_4, window_bounds = array<i64: 16, 128>}]} {
    %c0 = arith.constant 0 : index
    %c0_0 = arith.constant 0 : index
    %0 = vector.load %arg4[%c0, %c0_0] : memref<4x128xf32, #tpu.memory_space<vmem>>, vector<4x128xf32>
    %c0_1 = arith.constant 0 : index
    %c0_2 = arith.constant 0 : index
    %1 = vector.load %arg1[%c0_1, %c0_2] : memref<16x128xf32, #tpu.memory_space<vmem>>, vector<16x128xf32>
    %c0_3 = arith.constant 0 : index
    %c0_4 = arith.constant 0 : index
    %2 = vector.load %arg2[%c0_3, %c0_4] : memref<128x128xf32, #tpu.memory_space<vmem>>, vector<128x128xf32>
    %cst = arith.constant dense<0.000000e+00> : vector<16x128xf32>
    %3 = tpu.matmul %1, %2, %cst {dimension_numbers = #tpu.dot_dimension_numbers<[1], [0], [0], [1], [0, 0, 1, 1], [], []>} : vector<16x128xf32>, vector<128x128xf32>, vector<16x128xf32> -> vector<16x128xf32>
    %4 = vector.extract_strided_slice %0 {offsets = [0, 0], sizes = [1, 128], strides = [1, 1]} : vector<4x128xf32> to vector<1x128xf32>
    %5 = vector.broadcast %4 : vector<1x128xf32> to vector<16x128xf32>
    %6 = arith.addf %3, %5 : vector<16x128xf32>
    %cst_5 = arith.constant 0.000000e+00 : f32
    %7 = vector.broadcast %cst_5 : f32 to vector<16x128xf32>
    %8 = arith.maximumf %6, %7 : vector<16x128xf32>
    %c0_6 = arith.constant 0 : index
    %c0_7 = arith.constant 0 : index
    %9 = vector.load %arg3[%c0_6, %c0_7] : memref<128x128xf32, #tpu.memory_space<vmem>>, vector<128x128xf32>
    %cst_8 = arith.constant dense<0.000000e+00> : vector<16x128xf32>
    %10 = tpu.matmul %8, %9, %cst_8 {dimension_numbers = #tpu.dot_dimension_numbers<[1], [0], [0], [1], [0, 0, 1, 1], [], []>} : vector<16x128xf32>, vector<128x128xf32>, vector<16x128xf32> -> vector<16x128xf32>
    %11 = vector.extract_strided_slice %0 {offsets = [1, 0], sizes = [1, 128], strides = [1, 1]} : vector<4x128xf32> to vector<1x128xf32>
    %12 = vector.broadcast %11 : vector<1x128xf32> to vector<16x128xf32>
    %13 = arith.addf %10, %12 : vector<16x128xf32>
    %c0_9 = arith.constant 0 : index
    %c0_10 = arith.constant 0 : index
    %14 = vector.load %arg1[%c0_9, %c0_10] : memref<16x128xf32, #tpu.memory_space<vmem>>, vector<16x128xf32>
    %15 = arith.addf %13, %14 : vector<16x128xf32>
    %16 = tpu.iota {dimensions = array<i32: 1>} : vector<16x128xi32>
    %c32_i32 = arith.constant 32 : i32
    %17 = vector.broadcast %c32_i32 : i32 to vector<16x128xi32>
    %18 = arith.cmpi slt, %16, %17 : vector<16x128xi32>
    %cst_11 = arith.constant 0.000000e+00 : f32
    %19 = vector.broadcast %cst_11 : f32 to vector<16x128xf32>
    %20 = arith.select %18, %15, %19 : vector<16x128xi1>, vector<16x128xf32>
    %cst_12 = arith.constant dense<0.000000e+00> : vector<16xf32>
    %21 = vector.multi_reduction <add>, %20, %cst_12 [1] : vector<16x128xf32> to vector<16xf32>
    %22 = vector.shape_cast %21 : vector<16xf32> to vector<16x1xf32>
    %cst_13 = arith.constant 3.125000e-02 : f32
    %23 = vector.broadcast %cst_13 : f32 to vector<16x1xf32>
    %24 = arith.mulf %22, %23 : vector<16x1xf32>
    %25 = vector.broadcast %24 : vector<16x1xf32> to vector<16x128xf32>
    %26 = arith.subf %15, %25 : vector<16x128xf32>
    %cst_14 = arith.constant 0.000000e+00 : f32
    %27 = vector.broadcast %cst_14 : f32 to vector<16x128xf32>
    %28 = arith.select %18, %26, %27 : vector<16x128xi1>, vector<16x128xf32>
    %29 = arith.mulf %28, %28 : vector<16x128xf32>
    %cst_15 = arith.constant dense<0.000000e+00> : vector<16xf32>
    %30 = vector.multi_reduction <add>, %29, %cst_15 [1] : vector<16x128xf32> to vector<16xf32>
    %31 = vector.shape_cast %30 : vector<16xf32> to vector<16x1xf32>
    %cst_16 = arith.constant 3.125000e-02 : f32
    %32 = vector.broadcast %cst_16 : f32 to vector<16x1xf32>
    %33 = arith.mulf %31, %32 : vector<16x1xf32>
    %34 = vector.broadcast %24 : vector<16x1xf32> to vector<16x128xf32>
    %35 = arith.subf %15, %34 : vector<16x128xf32>
    %cst_17 = arith.constant 9.99999974E-6 : f32
    %36 = vector.broadcast %cst_17 : f32 to vector<16x1xf32>
    %37 = arith.addf %33, %36 : vector<16x1xf32>
    %38 = math.rsqrt %37 : vector<16x1xf32>
    %39 = vector.broadcast %38 : vector<16x1xf32> to vector<16x128xf32>
    %40 = arith.mulf %35, %39 : vector<16x128xf32>
    %41 = vector.extract_strided_slice %0 {offsets = [2, 0], sizes = [1, 128], strides = [1, 1]} : vector<4x128xf32> to vector<1x128xf32>
    %42 = vector.broadcast %41 : vector<1x128xf32> to vector<16x128xf32>
    %43 = arith.mulf %40, %42 : vector<16x128xf32>
    %44 = vector.extract_strided_slice %0 {offsets = [3, 0], sizes = [1, 128], strides = [1, 1]} : vector<4x128xf32> to vector<1x128xf32>
    %45 = vector.broadcast %44 : vector<1x128xf32> to vector<16x128xf32>
    %46 = arith.addf %43, %45 : vector<16x128xf32>
    %c0_18 = arith.constant 0 : index
    %c0_19 = arith.constant 0 : index
    %47 = vector.load %arg5[%c0_18, %c0_19] : memref<16x128xf32, #tpu.memory_space<vmem>>, vector<16x128xf32>
    tpu.vector_store %arg5[%c0_18, %c0_19], %46 {strides = array<i32>} : memref<16x128xf32, #tpu.memory_space<vmem>>, vector<16x128xf32>,
    return
  }
  func.func @transform_0(%arg0: i32) -> (i32, i32) {
    %c0_i32 = arith.constant 0 : i32
    %c0_i32_0 = arith.constant 0 : i32
    return %arg0, %c0_i32 : i32, i32
  }
  func.func @transform_1(%arg0: i32) -> (i32, i32) {
    %c0_i32 = arith.constant 0 : i32
    %c0_i32_0 = arith.constant 0 : i32
    %c0_i32_1 = arith.constant 0 : i32
    return %c0_i32, %c0_i32_0 : i32, i32
  }
  func.func @transform_2(%arg0: i32) -> (i32, i32) {
    %c0_i32 = arith.constant 0 : i32
    %c0_i32_0 = arith.constant 0 : i32
    %c0_i32_1 = arith.constant 0 : i32
    return %c0_i32, %c0_i32_0 : i32, i32
  }
  func.func @transform_3(%arg0: i32) -> (i32, i32) {
    %c0_i32 = arith.constant 0 : i32
    %c0_i32_0 = arith.constant 0 : i32
    %c0_i32_1 = arith.constant 0 : i32
    return %c0_i32, %c0_i32_0 : i32, i32
  }
  func.func @transform_4(%arg0: i32) -> (i32, i32) {
    %c0_i32 = arith.constant 0 : i32
    %c0_i32_0 = arith.constant 0 : i32
    return %arg0, %c0_i32 : i32, i32
  }
}

</mosaic_0001>

<llo_original>
// kernel: tpu_custom_call.1
$region0: #{tpu_custom_call.1}
  #allocation0 [shape = 'u32[]', space=smem, size = 0x4, offset = 0x4, fixed_abs, tag = 'smem constant byte address 0x4 - core index']
  #allocation1 [shape = 'u32[144,128]{1,0:T(1,128)}', space=vmem, size = 0x12000, scoped, tag = 'internal scratch']
  %s0 = inlined_call_operand.hbm [shape: f32[16,128], index: 0, kind: input, shape index: {}]
  %s1 = inlined_call_operand.hbm [shape: f32[128,128], index: 1, kind: input, shape index: {}]
  %s2 = inlined_call_operand.hbm [shape: f32[128,128], index: 2, kind: input, shape index: {}]
  %s3 = inlined_call_operand.vmem [shape: f32[4,128], index: 3, kind: input, shape index: {}]
  %s4 = inlined_call_operand.hbm [shape: f32[16,128], index: 4, kind: output, shape index: {}]
  %s5 = sld [smem:[#allocation0]]
  $region38: #{tpu_custom_call.1} parent=0
    _
  %s7 = ssub.s32 1, %s5
  %s8 = scalar_select 0, %s7, %s5
  $region1: #{tpu_custom_call.1} parent=0
    #allocation2 [shape = 'u8[8192]{0}', space=vmem, size = 0x2000, scoped, tag = 'input window, operand 0, single buffered']
    #allocation3 [shape = 's32[1]{0}', space=sflag, size = 0x4, scoped, tag = 'scoped memory for tpu_custom_call.1']
    #allocation4 [shape = 's32[1]{0}', space=sflag, size = 0x4, scoped, tag = 'scoped memory for tpu_custom_call.1']
    #allocation5 [shape = 'u8[65536]{0}', space=vmem, size = 0x10000, scoped, tag = 'input window, operand 1, single buffered']
    #allocation6 [shape = 's32[1]{0}', space=sflag, size = 0x4, scoped, tag = 'scoped memory for tpu_custom_call.1']
    #allocation7 [shape = 'u8[65536]{0}', space=vmem, size = 0x10000, scoped, tag = 'input window, operand 2, single buffered']
    #allocation8 [shape = 'u8[8192]{0}', space=vmem, size = 0x2000, scoped, tag = 'output window, operand 0, single buffered']
    %9 = vsyncpa [#allocation3], 0
    %10 = vsyncpa [#allocation6], 0
    %11 = vsyncpa [#allocation4], 0
    // Predicated region
    $region2: #{tpu_custom_call.1} parent=1 // pred_check
      _
    $region3: #{tpu_custom_call.1} parent=1 // pred_check_branch
      %13 = sbr.rel (0) target = $region5
    $region4: #{tpu_custom_call.1} parent=1 // pred_region
      %s15 = ssub.s32 256, 256
      %16 = vsyncadd [#allocation3], %s15
      %s17 = sshll.u32 [#allocation2], 4
      %s18 = int_to_ptr.vmem [resolvable:$true] %s17
      %23 = dma.hbm_to_vmem [thread:$0]  %s0, 256, %s18, [#allocation3], 128, 128, 8
    $region5: #{tpu_custom_call.1} parent=1 // pred_fallthru
      _
    // Predicated region
    $region6: #{tpu_custom_call.1} parent=1 // pred_check
      _
    $region7: #{tpu_custom_call.1} parent=1 // pred_check_branch
      %25 = sbr.rel (0) target = $region9
    $region8: #{tpu_custom_call.1} parent=1 // pred_region
      %s27 = ssub.s32 2048, 2048
      %28 = vsyncadd [#allocation6], %s27
      %s29 = sshll.u32 [#allocation5], 4
      %s30 = int_to_ptr.vmem [resolvable:$true] %s29
      %35 = dma.hbm_to_vmem [thread:$0]  %s1, 2048, %s30, [#allocation6], 128, 128, 8
    $region9: #{tpu_custom_call.1} parent=1 // pred_fallthru
      _
    // Predicated region
    $region10: #{tpu_custom_call.1} parent=1 // pred_check
      _
    $region11: #{tpu_custom_call.1} parent=1 // pred_check_branch
      %37 = sbr.rel (0) target = $region13
    $region12: #{tpu_custom_call.1} parent=1 // pred_region
      %s39 = ssub.s32 2048, 2048
      %40 = vsyncadd [#allocation6], %s39
      %s41 = sshll.u32 [#allocation7], 4
      %s42 = int_to_ptr.vmem [resolvable:$true] %s41
      %47 = dma.hbm_to_vmem [thread:$0]  %s2, 2048, %s42, [#allocation6], 128, 128, 8
    $region13: #{tpu_custom_call.1} parent=1 // pred_fallthru
      _
    // Predicated region
    $region14: #{tpu_custom_call.1} parent=1 // pred_check
      _
    $region15: #{tpu_custom_call.1} parent=1 // pred_check_branch
      %49 = sbr.rel (0) target = $region17
    $region16: #{tpu_custom_call.1} parent=1 // pred_region
      _
    $region17: #{tpu_custom_call.1} parent=1 // pred_fallthru
      _
    // Predicated region
    $region18: #{tpu_custom_call.1} parent=1 // pred_check
      _
    $region19: #{tpu_custom_call.1} parent=1 // pred_check_branch
      %51 = sbr.rel (0) target = $region21
    $region20: #{tpu_custom_call.1} parent=1 // pred_region
      %52 = dma.done [#allocation3], 256
    $region21: #{tpu_custom_call.1} parent=1 // pred_fallthru
      _
    // Predicated region
    $region22: #{tpu_custom_call.1} parent=1 // pred_check
      _
    $region23: #{tpu_custom_call.1} parent=1 // pred_check_branch
      %54 = sbr.rel (0) target = $region25
    $region24: #{tpu_custom_call.1} parent=1 // pred_region
      %55 = dma.done [#allocation6], 2048
    $region25: #{tpu_custom_call.1} parent=1 // pred_fallthru
      _
    // Predicated region
    $region26: #{tpu_custom_call.1} parent=1 // pred_check
      _
    $region27: #{tpu_custom_call.1} parent=1 // pred_check_branch
      %57 = sbr.rel (0) target = $region29
    $region28: #{tpu_custom_call.1} parent=1 // pred_region
      %58 = dma.done [#allocation6], 2048
    $region29: #{tpu_custom_call.1} parent=1 // pred_fallthru
      _
    %v59 = vld [vmem:[%s3] sm:$0xf]
    %v60 = vld [vmem:[#allocation2] sm:$0xff]
    %v61 = vld [vmem:[#allocation2 + $0x8] sm:$0xff]
    %v62 = vld [vmem:[#allocation5] sm:$0xff]
    %v63 = vld [vmem:[#allocation5 + $0x8] sm:$0xff]
    %v64 = vld [vmem:[#allocation5 + $0x10] sm:$0xff]
    %v65 = vld [vmem:[#allocation5 + $0x18] sm:$0xff]
    %v66 = vld [vmem:[#allocation5 + $0x20] sm:$0xff]
    %v67 = vld [vmem:[#allocation5 + $0x28] sm:$0xff]
    %v68 = vld [vmem:[#allocation5 + $0x30] sm:$0xff]
    %v69 = vld [vmem:[#allocation5 + $0x38] sm:$0xff]
    %v70 = vld [vmem:[#allocation5 + $0x40] sm:$0xff]
    %v71 = vld [vmem:[#allocation5 + $0x48] sm:$0xff]
    %v72 = vld [vmem:[#allocation5 + $0x50] sm:$0xff]
    %v73 = vld [vmem:[#allocation5 + $0x58] sm:$0xff]
    %v74 = vld [vmem:[#allocation5 + $0x60] sm:$0xff]
    %v75 = vld [vmem:[#allocation5 + $0x68] sm:$0xff]
    %v76 = vld [vmem:[#allocation5 + $0x70] sm:$0xff]
    %v77 = vld [vmem:[#allocation5 + $0x78] sm:$0xff]
    %v78 = vlaneseq
    %v79 = vshrl.u32 %v78, 7
    %v80 = vsub.s32 0, %v79
    %v81 = vrot.slane %v59, %v80
    %82 = vmatprep.subr.mxu0 0.0
    %83 = vmatpush1.msra.mxu0 %v77
    %84 = vmatprep.subr.mxu0 0.0
    %85 = vmatpush1.msra.mxu0 %v76
    %86 = vmatprep.subr.mxu0 0.0
    %87 = vmatpush1.msra.mxu0 %v75
    %88 = vmatprep.subr.mxu0 0.0
    %89 = vmatpush1.msra.mxu0 %v74
    %90 = vmatprep.subr.mxu0 0.0
    %91 = vmatpush1.msra.mxu0 %v73
    %92 = vmatprep.subr.mxu0 0.0
    %93 = vmatpush1.msra.mxu0 %v72
    %94 = vmatprep.subr.mxu0 0.0
    %95 = vmatpush1.msra.mxu0 %v71
    %96 = vmatprep.subr.mxu0 0.0
    %97 = vmatpush1.msra.mxu0 %v70
    %98 = vmatprep.subr.mxu0 0.0
    %99 = vmatpush1.msra.mxu0 %v69
    %100 = vmatprep.subr.mxu0 0.0
    %101 = vmatpush1.msra.mxu0 %v68
    %102 = vmatprep.subr.mxu0 0.0
    %103 = vmatpush1.msra.mxu0 %v67
    %104 = vmatprep.subr.mxu0 0.0
    %105 = vmatpush1.msra.mxu0 %v66
    %106 = vmatprep.subr.mxu0 0.0
    %107 = vmatpush1.msra.mxu0 %v65
    %108 = vmatprep.subr.mxu0 0.0
    %109 = vmatpush1.msra.mxu0 %v64
    %110 = vmatprep.subr.mxu0 0.0
    %111 = vmatpush1.msra.mxu0 %v63
    %112 = vmatprep.subr.mxu0 0.0
    %113 = vmatpush1.msra.mxu0 %v62
    %114 = vmatprep.subr.mxu0 0.0
    %115 = vmatpush2.msra.mxu0 0.0
    %116 = vmatprep.subr.mxu0 0.0
    %117 = vmatpush2.msra.mxu0 0.0
    %118 = vmatprep.subr.mxu0 0.0
    %119 = vmatpush2.msra.mxu0 0.0
    %120 = vmatprep.subr.mxu0 0.0
    %121 = vmatpush2.msra.mxu0 0.0
    %122 = vmatprep.subr.mxu0 0.0
    %123 = vmatpush2.msra.mxu0 0.0
    %124 = vmatprep.subr.mxu0 0.0
    %125 = vmatpush2.msra.mxu0 0.0
    %126 = vmatprep.subr.mxu0 0.0
    %127 = vmatpush2.msra.mxu0 0.0
    %128 = vmatprep.subr.mxu0 0.0
    %129 = vmatpush2.msra.mxu0 0.0
    %130 = vmatprep.subr.mxu0 0.0
    %131 = vmatpush2.msra.mxu0 0.0
    %132 = vmatprep.subr.mxu0 0.0
    %133 = vmatpush2.msra.mxu0 0.0
    %134 = vmatprep.subr.mxu0 0.0
    %135 = vmatpush2.msra.mxu0 0.0
    %136 = vmatprep.subr.mxu0 0.0
    %137 = vmatpush2.msra.mxu0 0.0
    %138 = vmatprep.subr.mxu0 0.0
    %139 = vmatpush2.msra.mxu0 0.0
    %140 = vmatprep.subr.mxu0 0.0
    %141 = vmatpush2.msra.mxu0 0.0
    %142 = vmatprep.subr.mxu0 0.0
    %143 = vmatpush2.msra.mxu0 0.0
    %144 = vmatprep.subr.mxu0 0.0
    %145 = vmatpush2.msra.mxu0 0.0
    %146 = vmatprep.mubr.f32.mxu0 0.0
    %147 = vmatmul.mubr.f32.gmra.mxu0 %v60
    %v148 = vpop.f32.mrf.mxu0
    %v149 = vadd.f32 %v81, %v148
    %v150 = vpop.f32.mrf.mxu0
    %151 = vmatprep.mubr.f32.mxu0 0.0
    %152 = vmatmul.mubr.f32.gmra.mxu0 %v61
    %v153 = vpop.f32.mrf.mxu0
    %v154 = vadd.f32 %v81, %v153
    %v155 = vpop.f32.mrf.mxu0
    %156 = vdwg.mxu0
    %v157 = vmax.f32 %v149, 0.0
    %v158 = vmax.f32 %v154, 0.0
    %v159 = vld [vmem:[#allocation7] sm:$0xff]
    %v160 = vld [vmem:[#allocation7 + $0x8] sm:$0xff]
    %v161 = vld [vmem:[#allocation7 + $0x10] sm:$0xff]
    %v162 = vld [vmem:[#allocation7 + $0x18] sm:$0xff]
    %v163 = vld [vmem:[#allocation7 + $0x20] sm:$0xff]
    %v164 = vld [vmem:[#allocation7 + $0x28] sm:$0xff]
    %v165 = vld [vmem:[#allocation7 + $0x30] sm:$0xff]
    %v166 = vld [vmem:[#allocation7 + $0x38] sm:$0xff]
    %v167 = vld [vmem:[#allocation7 + $0x40] sm:$0xff]
    %v168 = vld [vmem:[#allocation7 + $0x48] sm:$0xff]
    %v169 = vld [vmem:[#allocation7 + $0x50] sm:$0xff]
    %v170 = vld [vmem:[#allocation7 + $0x58] sm:$0xff]
    %v171 = vld [vmem:[#allocation7 + $0x60] sm:$0xff]
    %v172 = vld [vmem:[#allocation7 + $0x68] sm:$0xff]
    %v173 = vld [vmem:[#allocation7 + $0x70] sm:$0xff]
    %v174 = vld [vmem:[#allocation7 + $0x78] sm:$0xff]
    %v175 = vlaneseq
    %v176 = vshrl.u32 %v175, 7
    %v177 = vsub.s32 1, %v176
    %v178 = vrot.slane %v59, %v177
    %179 = vmatprep.subr.mxu0 0.0
    %180 = vmatpush1.msra.mxu0 %v174
    %181 = vmatprep.subr.mxu0 0.0
    %182 = vmatpush1.msra.mxu0 %v173
    %183 = vmatprep.subr.mxu0 0.0
    %184 = vmatpush1.msra.mxu0 %v172
    %185 = vmatprep.subr.mxu0 0.0
    %186 = vmatpush1.msra.mxu0 %v171
    %187 = vmatprep.subr.mxu0 0.0
    %188 = vmatpush1.msra.mxu0 %v170
    %189 = vmatprep.subr.mxu0 0.0
    %190 = vmatpush1.msra.mxu0 %v169
    %191 = vmatprep.subr.mxu0 0.0
    %192 = vmatpush1.msra.mxu0 %v168
    %193 = vmatprep.subr.mxu0 0.0
    %194 = vmatpush1.msra.mxu0 %v167
    %195 = vmatprep.subr.mxu0 0.0
    %196 = vmatpush1.msra.mxu0 %v166
    %197 = vmatprep.subr.mxu0 0.0
    %198 = vmatpush1.msra.mxu0 %v165
    %199 = vmatprep.subr.mxu0 0.0
    %200 = vmatpush1.msra.mxu0 %v164
    %201 = vmatprep.subr.mxu0 0.0
    %202 = vmatpush1.msra.mxu0 %v163
    %203 = vmatprep.subr.mxu0 0.0
    %204 = vmatpush1.msra.mxu0 %v162
    %205 = vmatprep.subr.mxu0 0.0
    %206 = vmatpush1.msra.mxu0 %v161
    %207 = vmatprep.subr.mxu0 0.0
    %208 = vmatpush1.msra.mxu0 %v160
    %209 = vmatprep.subr.mxu0 0.0
    %210 = vmatpush1.msra.mxu0 %v159
    %211 = vmatprep.subr.mxu0 0.0
    %212 = vmatpush2.msra.mxu0 0.0
    %213 = vmatprep.subr.mxu0 0.0
    %214 = vmatpush2.msra.mxu0 0.0
    %215 = vmatprep.subr.mxu0 0.0
    %216 = vmatpush2.msra.mxu0 0.0
    %217 = vmatprep.subr.mxu0 0.0
    %218 = vmatpush2.msra.mxu0 0.0
    %219 = vmatprep.subr.mxu0 0.0
    %220 = vmatpush2.msra.mxu0 0.0
    %221 = vmatprep.subr.mxu0 0.0
    %222 = vmatpush2.msra.mxu0 0.0
    %223 = vmatprep.subr.mxu0 0.0
    %224 = vmatpush2.msra.mxu0 0.0
    %225 = vmatprep.subr.mxu0 0.0
    %226 = vmatpush2.msra.mxu0 0.0
    %227 = vmatprep.subr.mxu0 0.0
    %228 = vmatpush2.msra.mxu0 0.0
    %229 = vmatprep.subr.mxu0 0.0
    %230 = vmatpush2.msra.mxu0 0.0
    %231 = vmatprep.subr.mxu0 0.0
    %232 = vmatpush2.msra.mxu0 0.0
    %233 = vmatprep.subr.mxu0 0.0
    %234 = vmatpush2.msra.mxu0 0.0
    %235 = vmatprep.subr.mxu0 0.0
    %236 = vmatpush2.msra.mxu0 0.0
    %237 = vmatprep.subr.mxu0 0.0
    %238 = vmatpush2.msra.mxu0 0.0
    %239 = vmatprep.subr.mxu0 0.0
    %240 = vmatpush2.msra.mxu0 0.0
    %241 = vmatprep.subr.mxu0 0.0
    %242 = vmatpush2.msra.mxu0 0.0
    %243 = vmatprep.mubr.f32.mxu0 0.0
    %244 = vmatmul.mubr.f32.gmra.mxu0 %v157
    %v245 = vpop.f32.mrf.mxu0
    %v246 = vadd.f32 %v178, %v245
    %v247 = vpop.f32.mrf.mxu0
    %248 = vmatprep.mubr.f32.mxu0 0.0
    %249 = vmatmul.mubr.f32.gmra.mxu0 %v158
    %v250 = vpop.f32.mrf.mxu0
    %v251 = vadd.f32 %v178, %v250
    %v252 = vpop.f32.mrf.mxu0
    %253 = vdwg.mxu0
    %v254 = vadd.f32 %v246, %v60
    %v255 = vadd.f32 %v251, %v61
    %v256 = vlaneseq
    %v257 = vand.u32 %v256, 127
    %vm258 = vcmp.lt.s32.totalorder %v257, 32
    %v259 = vsel %vm258, %v254, 0.0
    %v260 = vsel %vm258, %v255, 0.0
    %261 = vadd.xlane.f32.xlu0 %v259
    %v262 = vpop.xlane.xlu0 %261
    %263 = vadd.xlane.f32.xlu0 %v260
    %v264 = vpop.xlane.xlu0 %263
    %v265 = vmul.f32 %v262, 0.03125
    %v266 = vmul.f32 %v264, 0.03125
    %v267 = vsub.f32 %v254, %v265
    %v268 = vsub.f32 %v255, %v266
    %v269 = vsel %vm258, %v267, 0.0
    %v270 = vsel %vm258, %v268, 0.0
    %v271 = vmul.f32 %v269, %v269
    %v272 = vmul.f32 %v270, %v270
    %273 = vadd.xlane.f32.xlu0 %v271
    %v274 = vpop.xlane.xlu0 %273
    %275 = vadd.xlane.f32.xlu0 %v272
    %v276 = vpop.xlane.xlu0 %275
    %v277 = vmul.f32 %v274, 0.03125
    %v278 = vmul.f32 %v276, 0.03125
    %v279 = vadd.f32 %v277, 1e-05
    %v280 = vadd.f32 %v278, 1e-05
    %v281 = vrsqrt.pop %v279
    %v282 = vrsqrt.pop %v280
    %v283 = vmul.f32 %v267, %v281
    %v284 = vmul.f32 %v268, %v282
    %v285 = vlaneseq
    %v286 = vshrl.u32 %v285, 7
    %v287 = vsub.s32 2, %v286
    %v288 = vrot.slane %v59, %v287
    %v289 = vmul.f32 %v283, %v288
    %v290 = vmul.f32 %v284, %v288
    %v291 = vlaneseq
    %v292 = vshrl.u32 %v291, 7
    %v293 = vsub.s32 3, %v292
    %v294 = vrot.slane %v59, %v293
    %v295 = vadd.f32 %v289, %v294
    %v296 = vadd.f32 %v290, %v294
    %297 = vst [vmem:[#allocation8] sm:$0xff] %v295
    %298 = vst [vmem:[#allocation8 + $0x8] sm:$0xff] %v296
    // Predicated region
    $region30: #{tpu_custom_call.1} parent=1 // pred_check
      _
    $region31: #{tpu_custom_call.1} parent=1 // pred_check_branch
      %300 = sbr.rel (0) target = $region33
    $region32: #{tpu_custom_call.1} parent=1 // pred_region
      %s302 = ssub.s32 256, 256
      %303 = vsyncadd [#allocation4], %s302
      %s304 = sshll.u32 [#allocation8], 4
      %s305 = int_to_ptr.vmem [resolvable:$true] %s304
      %310 = dma.vmem_to_hbm [thread:$0]  %s305, 256, %s4, [#allocation4], 128, 128, 8
    $region33: #{tpu_custom_call.1} parent=1 // pred_fallthru
      _
    // Predicated region
    $region34: #{tpu_custom_call.1} parent=1 // pred_check
      _
    $region35: #{tpu_custom_call.1} parent=1 // pred_check_branch
      %312 = sbr.rel (0) target = $region37
    $region36: #{tpu_custom_call.1} parent=1 // pred_region
      %313 = dma.done [#allocation4], 256
    $region37: #{tpu_custom_call.1} parent=1 // pred_fallthru
      _
    %314 = vsyncpa [#allocation3], 1
    %315 = vsyncpa [#allocation6], 1
    %316 = vsyncpa [#allocation4], 1

</llo_original>
